<compile_context>
chip_gen: v7x
topology: tpu7x:2x2x1
jax: 0.10.0
libtpu: 0.0.40
codegen_flags: <defaults>
</compile_context>

<pallas_src>
import math

import jax
import jax.numpy as jnp
from jax import lax
from jax.experimental import pallas as pl
from jax.experimental.pallas import tpu as pltpu


def _round_up(x: int, m: int) -> int:
    return ((x + m - 1) // m) * m


def _embedding_gather_kernel(ids_ref, w_hbm, o_ref, row_buf, sem):
    # ids_ref: (N_pad,) int32 token ids, scalar-prefetched into SMEM.
    # w_hbm:   (V, Hp) embedding table, left in HBM (memory_space=pl.ANY).
    # o_ref:   (T, Hp) output tile in VMEM (Hp % 128 == 0 -> lane-dense).
    # row_buf: (T, Hp) VMEM scratch that the row DMAs land in.
    # sem:     single DMA semaphore shared by all row copies of this tile.
    t_tile = o_ref.shape[0]
    base = pl.program_id(0) * t_tile

    # Issue all T row gathers; they overlap one another (and the pipeline's
    # writeback of the previous output tile).
    def _start(t, carry):
        row = ids_ref[base + t]
        pltpu.make_async_copy(
            w_hbm.at[pl.ds(row, 1)],
            row_buf.at[pl.ds(t, 1)],
            sem,
        ).start()
        return carry

    lax.fori_loop(0, t_tile, _start, 0)

    # Wait for all of them.  Every copy has an identical byte count, so waiting
    # T times on the shared semaphore with a same-shaped descriptor is exact.
    def _wait(t, carry):
        pltpu.make_async_copy(
            w_hbm.at[pl.ds(0, 1)],
            row_buf.at[pl.ds(0, 1)],
            sem,
        ).wait()
        return carry

    lax.fori_loop(0, t_tile, _wait, 0)

    o_ref[...] = row_buf[...]


def embedding_lookup(ids_flat: jax.Array, weight_padded: jax.Array,
                     hidden_size: int, *, tile: int = 256) -> jax.Array:
    """Gather rows of `weight_padded` (V, Hp) at `ids_flat` (N,) -> (N, hidden_size)."""
    n = ids_flat.shape[0]
    v, hp = weight_padded.shape

    # Token tile: a multiple of 8 (sublane granularity), capped by the padded
    # token count so tiny inputs don't do hundreds of dummy gathers.
    tile = max(8, min(tile, _round_up(n, 8)))
    n_pad = _round_up(n, tile)

    # Clamp ids so padded / out-of-range tokens never trigger OOB DMAs.
    ids = jnp.clip(ids_flat.astype(jnp.int32), 0, v - 1)
    ids_padded = jnp.zeros((n_pad,), jnp.int32).at[:n].set(ids)

    grid_spec = pltpu.PrefetchScalarGridSpec(
        num_scalar_prefetch=1,
        grid=(n_pad // tile,),
        in_specs=[
            # Embedding table stays in HBM; rows are gathered with manual DMAs.
            pl.BlockSpec(memory_space=pl.ANY),
        ],
        out_specs=pl.BlockSpec((tile, hp), lambda i, ids: (i, 0)),
        scratch_shapes=[
            pltpu.VMEM((tile, hp), weight_padded.dtype),
            pltpu.SemaphoreType.DMA,
        ],
    )

    out = pl.pallas_call(
        _embedding_gather_kernel,
        out_shape=jax.ShapeDtypeStruct((n_pad, hp), weight_padded.dtype),
        grid_spec=grid_spec,
        compiler_params=pltpu.CompilerParams(
            dimension_semantics=("parallel",),
            # Gather-path footprint: scratch (tile*hp*4) + double-buffered
            # output (2*tile*hp*4) — far under 16 MiB on every generation.
            vmem_limit_bytes=16 * 1024 * 1024,
        ),
    )(ids_padded, weight_padded)

    return out[:n, :hidden_size]


class EmbeddingLayer:
    """JAX/Pallas port of the PyTorch EmbeddingLayer (forward only)."""

    def __init__(self, input_size: int, hidden_size: int, padding_idx=None,
                 key=None):
        self.input_size = input_size
        self.hidden_size = hidden_size
        self.padding_idx = padding_idx
        if key is None:
            key = jax.random.PRNGKey(0)
        # torch.nn.init.xavier_uniform_ with gain = sqrt(2):
        # bound = gain * sqrt(6 / (fan_in + fan_out))
        gain = math.sqrt(2.0)
        bound = gain * math.sqrt(6.0 / (input_size + hidden_size))
        w = jax.random.uniform(
            key, (input_size, hidden_size), dtype=jnp.float32,
            minval=-bound, maxval=bound)
        if padding_idx is not None:
            w = w.at[padding_idx].set(0.0)
        self.weight = w
        # Lane-dense table: pad the hidden dim up to a multiple of 128 once at
        # init so per-row DMAs and output stores are full-lane.
        hp = _round_up(hidden_size, 128)
        if hp == hidden_size:
            self.weight_padded = w
        else:
            self.weight_padded = jnp.pad(w, ((0, 0), (0, hp - hidden_size)))

    def __call__(self, x: jax.Array) -> jax.Array:
        # x: integer ids of shape (B, S) -> output (B, S, H)
        orig_shape = x.shape
        ids_flat = x.reshape(-1)
        out_flat = embedding_lookup(ids_flat, self.weight_padded,
                                    self.hidden_size)
        return out_flat.reshape(*orig_shape, self.hidden_size)


if __name__ == "__main__":
    key = jax.random.PRNGKey(0)
    k_ids, k_w = jax.random.split(key)

    input_size = 50      # vocab size
    hidden_size = 32
    padding_idx = 0
    batch, seq = 2, 8

    layer = EmbeddingLayer(input_size, hidden_size, padding_idx=padding_idx,
                           key=k_w)

    x = jax.random.randint(k_ids, (batch, seq), minval=0, maxval=input_size,
                           dtype=jnp.int32)
    # force a couple of padding tokens to exercise padding_idx semantics
    x = x.at[0, 0].set(padding_idx).at[1, 3].set(padding_idx)

    out = layer(x)
    out = jax.block_until_ready(out)

    # reference check against plain JAX gather
    ref = jnp.take(layer.weight, x, axis=0)
    assert out.shape == (batch, seq, hidden_size), out.shape
    assert jnp.allclose(out, ref, rtol=1e-6, atol=1e-6), \
        "mismatch vs reference gather"
    assert float(jnp.max(jnp.abs(out[0, 0]))) < 1e-6, "padding_idx row not zero"
    assert float(jnp.max(jnp.abs(out[1, 3]))) < 1e-6, "padding_idx row not zero"

    print("KERNEL_OK")
</pallas_src>

<mosaic_0001>
module attributes {stable_mosaic.version = 11 : i64} {
  func.func @_embedding_gather_kernel(%arg0: i32, %arg1: memref<16xi32, #tpu.memory_space<smem>>, %arg2: memref<50x128xf32, #tpu.memory_space<any>>, %arg3: memref<16x128xf32, #tpu.memory_space<vmem>>, %arg4: memref<16x128xf32, #tpu.memory_space<vmem>>, %arg5: memref<!tpu.dma_semaphore, #tpu.memory_space<semaphore_mem>>) attributes {dimension_semantics = [#tpu.dimension_semantics<parallel>], iteration_bounds = array<i64: 1>, scalar_prefetch = 1 : i64, scratch_operands = 2 : i64, tpu.core_type = #tpu.core_type<tc>, window_params = [{}, {transform_indices = @transform_1, window_bounds = array<i64: 16, 128>}]} {
    %c16_i32 = arith.constant 16 : i32
    %0 = arith.muli %arg0, %c16_i32 : i32
    %c0_i32 = arith.constant 0 : i32
    %c16_i32_0 = arith.constant 16 : i32
    %1 = arith.addi %c0_i32, %c16_i32_0 : i32
    %c1_i32 = arith.constant 1 : i32
    scf.for %arg6 = %c0_i32 to %1 step %c1_i32  : i32 {
      %5 = arith.addi %0, %arg6 : i32
      %6 = arith.index_cast %5 : i32 to index
      %7 = memref.load %arg1[%6] : memref<16xi32, #tpu.memory_space<smem>>
      %c0_i32_8 = arith.constant 0 : i32
      %8 = tpu.memref_slice %arg2[%7, %c0_i32_8] : memref<50x128xf32, #tpu.memory_space<any>> -> memref<1x128xf32, #tpu.memory_space<any>>
      %c0_i32_9 = arith.constant 0 : i32
      %9 = tpu.memref_slice %arg4[%arg6, %c0_i32_9] : memref<16x128xf32, #tpu.memory_space<vmem>> -> memref<1x128xf32, #tpu.memory_space<vmem>>
      tpu.enqueue_dma source(%8 : memref<1x128xf32, #tpu.memory_space<any>>) target(%9 : memref<1x128xf32, #tpu.memory_space<vmem>>) target_semaphore(%arg5 : memref<!tpu.dma_semaphore, #tpu.memory_space<semaphore_mem>>)
    }
    %c16_i32_1 = arith.constant 16 : i32
    %c0_i32_2 = arith.constant 0 : i32
    %c16_i32_3 = arith.constant 16 : i32
    %2 = arith.addi %c0_i32_2, %c16_i32_3 : i32
    %c1_i32_4 = arith.constant 1 : i32
    scf.for %arg6 = %c0_i32_2 to %2 step %c1_i32_4  : i32 {
      %c0_i32_8 = arith.constant 0 : i32
      %c0_i32_9 = arith.constant 0 : i32
      %5 = tpu.memref_slice %arg2[%c0_i32_8, %c0_i32_9] : memref<50x128xf32, #tpu.memory_space<any>> -> memref<1x128xf32, #tpu.memory_space<any>>
      %c0_i32_10 = arith.constant 0 : i32
      %c0_i32_11 = arith.constant 0 : i32
      %6 = tpu.memref_slice %arg4[%c0_i32_10, %c0_i32_11] : memref<16x128xf32, #tpu.memory_space<vmem>> -> memref<1x128xf32, #tpu.memory_space<vmem>>
      tpu.wait_dma2 semaphore(%arg5 : memref<!tpu.dma_semaphore, #tpu.memory_space<semaphore_mem>>) src(%5 : memref<1x128xf32, #tpu.memory_space<any>>) dst(%6 : memref<1x128xf32, #tpu.memory_space<vmem>>)
    }
    %c0 = arith.constant 0 : index
    %c0_5 = arith.constant 0 : index
    %3 = vector.load %arg4[%c0, %c0_5] : memref<16x128xf32, #tpu.memory_space<vmem>>, vector<16x128xf32>
    %c0_6 = arith.constant 0 : index
    %c0_7 = arith.constant 0 : index
    %4 = vector.load %arg3[%c0_6, %c0_7] : memref<16x128xf32, #tpu.memory_space<vmem>>, vector<16x128xf32>
    tpu.vector_store %arg3[%c0_6, %c0_7], %3 {strides = array<i32>} : memref<16x128xf32, #tpu.memory_space<vmem>>, vector<16x128xf32>,
    return
  }
  func.func @transform_1(%arg0: i32, %arg1: memref<16xi32, #tpu.memory_space<smem>>) -> (i32, i32) {
    %c0_i32 = arith.constant 0 : i32
    %c0_i32_0 = arith.constant 0 : i32
    return %arg0, %c0_i32 : i32, i32
  }
}

</mosaic_0001>

<llo_original>
// kernel: tpu_custom_call.1
$region0: #{tpu_custom_call.1}
  #allocation0 [shape = 'u32[]', space=smem, size = 0x4, offset = 0x4, fixed_abs, tag = 'smem constant byte address 0x4 - core index']
  #allocation1 [shape = 'u32[144,128]{1,0:T(1,128)}', space=vmem, size = 0x12000, scoped, tag = 'internal scratch']
  #allocation2 [shape = 'f32[16,128]{1,0:T(8,128)}', space=vmem, size = 0x2000, scoped, tag = 'scratch operand']
  #allocation3 [shape = 's32[1]{0}', space=sflag, size = 0x4, scoped, tag = 'scratch operand']
  #allocation4 [shape = 's32[1]{0}', space=sflag, size = 0x4, scoped, tag = 'scoped memory for tpu_custom_call.1']
  #allocation5 [shape = 'u8[512]{0}', space=smem, size = 0x200, scoped, tag = 'prefetched SMEM operand 0']
  #allocation8 [shape = 's32[]', space=sflag, size = 0x4, offset = 0, fixed_abs, tag = 'sflag constant byte address 0x0 - dummy sync flag']
  #allocation9 [shape = 's32[]', space=sflag, size = 0x4, offset = 0, fixed_abs, tag = 'sflag constant byte address 0x0 - dummy sync flag']
  #allocation10 [shape = 'u32[]', space=smem, size = 0x4, offset = 0x44, fixed_abs, tag = 'smem constant byte address 0x44 - assertion arg 0']
  #allocation11 [shape = 'u32[]', space=smem, size = 0x4, offset = 0x48, fixed_abs, tag = 'smem constant byte address 0x48 - assertion arg 1']
  %s0 = inlined_call_operand.hbm [shape: s32[16], index: 0, kind: input, shape index: {}]
  %s1 = inlined_call_operand.hbm [shape: f32[50,128], index: 1, kind: input, shape index: {}]
  %s2 = inlined_call_operand.hbm [shape: f32[16,128], index: 2, kind: output, shape index: {}]
  %s3 = sld [smem:[#allocation0]]
  $region28: #{tpu_custom_call.1} parent=0
    _
  %s5 = ssub.s32 1, %s3
  %s6 = scalar_select 0, %s5, %s3
  %8 = dma.hbm_to_smem %s0, 16, [#allocation5], [#allocation4]
  %9 = dma.done [#allocation4], 16
  %10 = sfence
  $region1: #{tpu_custom_call.1} parent=0
    #allocation6 [shape = 'u8[8192]{0}', space=vmem, size = 0x2000, scoped, tag = 'output window, operand 0, single buffered']
    #allocation7 [shape = 's32[1]{0}', space=sflag, size = 0x4, scoped, tag = 'scoped memory for tpu_custom_call.1']
    %11 = vsyncpa [#allocation7], 0
    %s12 = smul.u32 0, 16
    loop: start=0, step=1, limit=16
    $region2: #{tpu_custom_call.1} parent=1 // loop_pre_header
      _
    $region3: #{tpu_custom_call.1} parent=1 // loop_header
      %s14 = sphi 0, %s18
      %p15 = scmp.ge.s32.totalorder %s14, 16
    $region4: #{tpu_custom_call.1} parent=1 // loop_header_branch
      %17 = sbr.rel (%p15) target = $region8
    $region5: #{tpu_custom_call.1} parent=1 // loop_body
      %s19 = sadd.s32 %s12, %s14
      %s20 = sld [smem:[#allocation5 + %s19]]
      %s21 = smul.addr %s20, 16
      %s22 = scalar_lea.hbm %s1, %s21
      %s23 = scalar_lea.vmem [#allocation2], %s14
      // Predicated region
      $region9: #{tpu_custom_call.1} parent=5 // pred_check
        _
      $region10: #{tpu_custom_call.1} parent=5 // pred_check_branch
        %25 = sbr.rel target = $region12
      $region11: #{tpu_custom_call.1} parent=5 // pred_region
        %26 = sst [smem:[#allocation10]] [#allocation9]
        %27 = sst [smem:[#allocation11]] [#allocation8]
      $region12: #{tpu_custom_call.1} parent=5 // pred_fallthru
        _
      %29 = shalt.err (0)
      %s31 = sshll.u32 %s23, 4
      %s32 = int_to_ptr.vmem [resolvable:$true] %s31
      %34 = dma.hbm_to_vmem [thread:$0]  %s22, 16, %s32, [#allocation3]
    $region6: #{tpu_custom_call.1} parent=1 // loop_footer
      %s18 = sadd.s32 1, %s14
    $region7: #{tpu_custom_call.1} parent=1 // loop_footer_branch
      %13 = sbr.rel target = $region3
    $region8: #{tpu_custom_call.1} parent=1 // loop_exit
      _
    loop: start=0, step=1, limit=16
    $region13: #{tpu_custom_call.1} parent=1 // loop_pre_header
      _
    $region14: #{tpu_custom_call.1} parent=1 // loop_header
      %s36 = sphi 0, %s40
      %p37 = scmp.ge.s32.totalorder %s36, 16
    $region15: #{tpu_custom_call.1} parent=1 // loop_header_branch
      %39 = sbr.rel (%p37) target = $region19
    $region16: #{tpu_custom_call.1} parent=1 // loop_body
      %s41 = smul.u32 1, 1
      %s42 = sshll.u32 %s41, 4
      %43 = dma.done [#allocation3], %s42
    $region17: #{tpu_custom_call.1} parent=1 // loop_footer
      %s40 = sadd.s32 1, %s36
    $region18: #{tpu_custom_call.1} parent=1 // loop_footer_branch
      %35 = sbr.rel target = $region14
    $region19: #{tpu_custom_call.1} parent=1 // loop_exit
      _
    %v44 = vld [vmem:[#allocation2] sm:$0xff]
    %v45 = vld [vmem:[#allocation2 + $0x8] sm:$0xff]
    %46 = vst [vmem:[#allocation6] sm:$0xff] %v44
    %47 = vst [vmem:[#allocation6 + $0x8] sm:$0xff] %v45
    // Predicated region
    $region20: #{tpu_custom_call.1} parent=1 // pred_check
      _
    $region21: #{tpu_custom_call.1} parent=1 // pred_check_branch
      %49 = sbr.rel (0) target = $region23
    $region22: #{tpu_custom_call.1} parent=1 // pred_region
      %s51 = ssub.s32 256, 256
      %52 = vsyncadd [#allocation7], %s51
      %s53 = sshll.u32 [#allocation6], 4
      %s54 = int_to_ptr.vmem [resolvable:$true] %s53
      %59 = dma.vmem_to_hbm [thread:$0]  %s54, 256, %s2, [#allocation7], 128, 128, 8
    $region23: #{tpu_custom_call.1} parent=1 // pred_fallthru
      _
    // Predicated region
    $region24: #{tpu_custom_call.1} parent=1 // pred_check
      _
    $region25: #{tpu_custom_call.1} parent=1 // pred_check_branch
      %61 = sbr.rel (0) target = $region27
    $region26: #{tpu_custom_call.1} parent=1 // pred_region
      %62 = dma.done [#allocation7], 256
    $region27: #{tpu_custom_call.1} parent=1 // pred_fallthru
      _
    %63 = vsyncpa [#allocation7], 1
  %64 = vsyncmov [#allocation3]
  %s65 = vpop.sfrf %64
  %p66 = scmp.eq.s32.totalorder %s65, 0
  %p67 = pneg %p66
  %69 = shalt.err (%p67)

</llo_original>
